<compile_context>
chip_gen: v5e
topology: v5e:2x2
jax: 0.10.0
libtpu: 0.0.40
codegen_flags: <defaults>
</compile_context>

<pallas_src>
import functools

import jax
import jax.numpy as jnp
from jax.experimental import pallas as pl
from jax.experimental.pallas import tpu as pltpu


_LANE = 128          # lane (last-dim) tiling unit
_SUBLANE = 8         # sublane (second-to-last-dim) tiling unit
_SPLIT_MIN_ROWS = 1024   # split single-tile problems so >=2 grid steps (v7x: 2 TCs)
_MAX_IMGS_PER_STEP = 8   # cap on conv image packing (static unroll bound)


def _round_up(x, m):
    return ((x + m - 1) // m) * m


# ----------------------------------------------------------------------------
# Hardware-aware defaults (VMEM budget, MXU-native alignment, tile size).
# ----------------------------------------------------------------------------
@functools.lru_cache(maxsize=1)
def _tpu_spec():
    kind = ""
    try:
        kind = jax.devices()[0].device_kind.lower()
    except Exception:
        pass
    vmem = None
    try:
        vmem = int(pltpu.get_tpu_info().vmem_capacity_bytes)
    except Exception:
        pass
    if not vmem:
        vmem = (64 << 20) if "v7" in kind else (128 << 20)
    # Never request all of physical VMEM: leave headroom for compiler scratch
    # and semaphores (~48 MiB on v7x, ~96 MiB on 128 MiB parts).
    vmem_cap = max(32 << 20, min(vmem - (16 << 20), int(vmem * 3 // 4)))
    # v6e/v7x MXUs are 256-wide; v5e (and older) are 128-wide.
    mxu_align = 256 if ("v6" in kind or "v7" in kind) else 128
    # Bigger tiles amortize ~0.35us per-grid-step overhead where VMEM allows.
    default_tile = 1024 if vmem >= (100 << 20) else 512
    return {"kind": kind, "vmem_bytes": vmem, "vmem_cap": vmem_cap,
            "mxu_align": mxu_align, "default_tile": default_tile}


def _pad_dim(d, align):
    """Pad a layer width to a lane multiple (128); bump to the MXU-native 256
    on v6e/v7x only when the relative padding waste is small."""
    p = _round_up(d, _LANE)
    if align > _LANE and p >= 2 * align:
        p = _round_up(p, align)
    return p


# ----------------------------------------------------------------------------
# Single-buffered resident blocks (probe once, eagerly, with a numeric check).
# ----------------------------------------------------------------------------
_BUFFERED_OK = None


def _buffered_supported():
    """Whether pipeline_mode=pl.Buffered(1) compiles AND produces correct
    results on this JAX/TPU combination."""
    global _BUFFERED_OK
    if _BUFFERED_OK is not None:
        return _BUFFERED_OK
    try:
        def _probe_kernel(x_ref, w_ref, o_ref):
            o_ref[...] = x_ref[...] + w_ref[...]

        x = jnp.arange(16 * 128, dtype=jnp.float32).reshape(16, 128)
        w = jnp.full((8, 128), 3.0, jnp.float32)
        expect = x + jnp.tile(w, (2, 1))
        probe = pl.pallas_call(
            _probe_kernel,
            out_shape=jax.ShapeDtypeStruct((16, 128), jnp.float32),
            grid_spec=pltpu.PrefetchScalarGridSpec(
                num_scalar_prefetch=0,
                grid=(2,),
                in_specs=[
                    pl.BlockSpec((8, 128), lambda i: (i, 0)),
                    pl.BlockSpec((8, 128), lambda i: (0, 0),
                                 pipeline_mode=pl.Buffered(1)),
                ],
                out_specs=pl.BlockSpec((8, 128), lambda i: (i, 0)),
            ),
        )
        got = jax.block_until_ready(probe(x, w))
        _BUFFERED_OK = bool(jnp.allclose(got, expect, atol=0.0, rtol=0.0))
    except Exception:
        _BUFFERED_OK = False
    return _BUFFERED_OK


def _resident_spec(shape, index_map):
    """Full-array block with a constant index_map (stays resident in VMEM).

    Single-buffered when supported: double-buffering a block that is fetched
    once is pure VMEM waste (matters most on v7x's 64 MiB VMEM)."""
    if _buffered_supported():
        return pl.BlockSpec(shape, index_map, pipeline_mode=pl.Buffered(1))
    return pl.BlockSpec(shape, index_map)


# ----------------------------------------------------------------------------
# Kernels
# ----------------------------------------------------------------------------
def _mlp_rows_kernel(n_layers, mxu_dtype, x_ref, *refs):
    """Rows layout: h (tm, d).  refs = (w0, b0, ..., w_{L-1}, b_{L-1}, out)."""
    out_ref = refs[-1]
    param_refs = refs[:-1]

    h = x_ref[...]
    for li in range(n_layers):
        w = param_refs[2 * li][...]        # (d_in_pad, d_out_pad), maybe bf16
        b = param_refs[2 * li + 1][...]    # (1, d_out_pad), f32
        if mxu_dtype is not None:
            h = h.astype(mxu_dtype)        # native-rate MXU operands
        # MXU matmul, f32 accumulation; bias add / ReLU stay in f32 on the VPU.
        h = jnp.dot(h, w, preferred_element_type=jnp.float32) + b
        if li != n_layers - 1:
            h = jnp.maximum(h, 0.0)
    out_ref[...] = h.astype(out_ref.dtype)


def _mlp_conv_kernel(n_layers, n_per, mxu_dtype, x_ref, *refs):
    """Channels-first layout: per image, h (C, ts); layers are  W^T @ h + b."""
    out_ref = refs[-1]
    param_refs = refs[:-1]

    ws = [param_refs[2 * li][...] for li in range(n_layers)]      # (d_out, d_in)
    bs = [param_refs[2 * li + 1][...] for li in range(n_layers)]  # (d_out, 1) f32
    for n in range(n_per):                 # static unroll over packed images
        h = x_ref[n]                       # (C, ts): channels x spatial tile
        for li in range(n_layers):
            hin = h.astype(mxu_dtype) if mxu_dtype is not None else h
            h = jnp.dot(ws[li], hin, preferred_element_type=jnp.float32) + bs[li]
            if li != n_layers - 1:
                h = jnp.maximum(h, 0.0)
        out_ref[n] = h.astype(out_ref.dtype)


# ----------------------------------------------------------------------------
# Wrappers (expect pre-padded / pre-cast / pre-transposed params)
# ----------------------------------------------------------------------------
def mlp_pallas_rows(x2d, weights, biases, *, mxu_dtype=None, tm=None):
    """x2d: (M, in_dim).  weights[i]: (d_in_pad_i, d_out_pad_i); biases[i]:
    (1, d_out_pad_i) f32.  Returns (M, d_out_pad_last); caller slices."""
    n_layers = len(weights)
    M, in_dim = x2d.shape
    out_pad = int(weights[-1].shape[1])
    spec = _tpu_spec()
    if tm is None:
        tm = spec["default_tile"]

    # Row tile: big tiles amortize per-grid-step overhead; a ragged final tile
    # is handled by Pallas block masking (no pad/slice HBM passes).  If the
    # whole problem fits in one tile but is big enough, split into two so a
    # 2-TC chip (v7x) gets >= 2 parallel grid steps.
    if M <= tm:
        tm_eff = M
        if M >= _SPLIT_MIN_ROWS:
            tm_eff = _round_up(pl.cdiv(M, 2), _SUBLANE)
    else:
        tm_eff = _round_up(tm, _SUBLANE)

    itemsize = x2d.dtype.itemsize
    params_flat = list(weights) + list(biases)
    param_bytes = sum(int(p.size) * p.dtype.itemsize for p in params_flat)
    # Resident params are fetched once; if single-buffering is unsupported the
    # pipeline double-buffers them, so budget them twice.
    param_factor = 1 if _buffered_supported() else 2
    widest = max([in_dim] + [int(w.shape[1]) for w in weights])

    def vmem_est(rows):
        return (param_factor * param_bytes
                + 2 * rows * in_dim * itemsize      # double-buffered input tile
                + 2 * rows * out_pad * itemsize     # double-buffered output tile
                + 2 * rows * widest * 4)            # f32 activation working set

    cap = spec["vmem_cap"]
    while tm_eff > 4 * _SUBLANE and vmem_est(tm_eff) > cap:
        tm_eff = max(4 * _SUBLANE, _round_up(tm_eff // 2, _SUBLANE))
    grid = (pl.cdiv(M, tm_eff),)

    in_specs = [pl.BlockSpec((tm_eff, in_dim), lambda i: (i, 0))]
    params = []
    for w, b in zip(weights, biases):
        in_specs.append(_resident_spec(w.shape, lambda i: (0, 0)))
        in_specs.append(_resident_spec(b.shape, lambda i: (0, 0)))
        params.extend([w, b])

    vmem_limit = int(min(cap, max(32 << 20, 2 * vmem_est(tm_eff))))
    flops = 2 * M * sum(int(w.shape[0]) * int(w.shape[1]) for w in weights)
    bytes_accessed = int(M * in_dim * itemsize + M * out_pad * itemsize + param_bytes)

    return pl.pallas_call(
        functools.partial(_mlp_rows_kernel, n_layers, mxu_dtype),
        out_shape=jax.ShapeDtypeStruct((M, out_pad), x2d.dtype),
        grid_spec=pltpu.PrefetchScalarGridSpec(
            num_scalar_prefetch=0,
            grid=grid,
            in_specs=in_specs,
            out_specs=pl.BlockSpec((tm_eff, out_pad), lambda i: (i, 0)),
        ),
        compiler_params=pltpu.CompilerParams(
            dimension_semantics=("parallel",),
            vmem_limit_bytes=vmem_limit),
        cost_estimate=pl.CostEstimate(flops=int(flops), transcendentals=0,
                                      bytes_accessed=bytes_accessed),
    )(x2d, *params)


def mlp_pallas_conv(x3, weights, biases, *, mxu_dtype=None, ts=None):
    """x3: (N, C, S) channels-first (S = H*W).  weights[i]: (d_out_i, d_in_pad_i)
    pre-transposed; biases[i]: (d_out_i, 1) f32.  1x1 conv == per-pixel MLP with
    the spatial axis on the lane dim (lane-dense stores, no NCHW<->NHWC
    transposes)."""
    n_layers = len(weights)
    N, C, S = x3.shape
    out_ch = int(weights[-1].shape[0])
    itemsize = x3.dtype.itemsize
    spec = _tpu_spec()
    if ts is None:
        ts = spec["default_tile"]

    # Spatial tile / image packing: when S is small, pack several images into
    # one grid step so per-step overhead and short stores don't dominate.
    if S > ts:
        ts_eff = _round_up(ts, _LANE)
        n_per = 1
    else:
        ts_eff = S
        n_per = max(1, min(N, ts // max(S, 1), _MAX_IMGS_PER_STEP))
        # Keep >= 2 grid steps when the per-step work is substantial (v7x: 2 TCs).
        if (n_per >= N and N >= 2 and N * C * S * itemsize >= (1 << 20)):
            n_per = pl.cdiv(N, 2)

    params_flat = list(weights) + list(biases)
    param_bytes = sum(int(p.size) * p.dtype.itemsize for p in params_flat)
    param_factor = 1 if _buffered_supported() else 2
    widest = max([C] + [int(w.shape[0]) for w in weights])

    def vmem_est(npack, tile):
        return (param_factor * param_bytes
                + 2 * npack * C * tile * itemsize
                + 2 * npack * out_ch * tile * itemsize
                + 2 * npack * widest * tile * 4)

    cap = spec["vmem_cap"]
    while n_per > 1 and vmem_est(n_per, ts_eff) > cap:
        n_per -= 1
    while ts_eff > _LANE and vmem_est(n_per, ts_eff) > cap:
        ts_eff = max(_LANE, _round_up(ts_eff // 2, _LANE))

    grid = (pl.cdiv(N, n_per), pl.cdiv(S, ts_eff))

    in_specs = [pl.BlockSpec((n_per, C, ts_eff), lambda n, s: (n, 0, s))]
    params = []
    for w, b in zip(weights, biases):
        in_specs.append(_resident_spec(w.shape, lambda n, s: (0, 0)))
        in_specs.append(_resident_spec(b.shape, lambda n, s: (0, 0)))
        params.extend([w, b])

    vmem_limit = int(min(cap, max(32 << 20, 2 * vmem_est(n_per, ts_eff))))
    flops = 2 * N * S * sum(int(w.shape[0]) * int(w.shape[1]) for w in weights)
    bytes_accessed = int(N * C * S * itemsize + N * out_ch * S * itemsize + param_bytes)

    return pl.pallas_call(
        functools.partial(_mlp_conv_kernel, n_layers, n_per, mxu_dtype),
        out_shape=jax.ShapeDtypeStruct((N, out_ch, S), x3.dtype),
        grid_spec=pltpu.PrefetchScalarGridSpec(
            num_scalar_prefetch=0,
            grid=grid,
            in_specs=in_specs,
            out_specs=pl.BlockSpec((n_per, out_ch, ts_eff), lambda n, s: (n, 0, s)),
        ),
        compiler_params=pltpu.CompilerParams(
            dimension_semantics=("parallel", "parallel"),
            vmem_limit_bytes=vmem_limit),
        cost_estimate=pl.CostEstimate(flops=int(flops), transcendentals=0,
                                      bytes_accessed=bytes_accessed),
    )(x3, *params)


# ----------------------------------------------------------------------------
# Module port
# ----------------------------------------------------------------------------
class MLPPallas:
    """JAX/Pallas port of the PyTorch MLP module (Linear or 1x1-Conv2d stack).

    All weight preprocessing (width padding, bf16 cast, conv transposition) is
    done once at construction so each call is a single pallas_call.
    """

    def __init__(self, in_dim, out_dim, hidden_list, use_conv=False, key=None,
                 mxu_dtype=jnp.bfloat16):
        self.use_conv = use_conv
        self.in_dim = in_dim
        self.out_dim = out_dim
        # bf16 MXU operands by default (f32 accumulation + f32 bias/ReLU stay
        # in-kernel); pass mxu_dtype=None for exact f32 operands.
        self.mxu_dtype = mxu_dtype
        _buffered_supported()   # eager probe: compile outside the hot path

        if key is None:
            key = jax.random.PRNGKey(0)
        dims = [in_dim] + list(hidden_list) + [out_dim]
        # Raw f32 parameters (PyTorch-like default init), kept for reference.
        self.weights, self.biases = [], []
        for d_in, d_out in zip(dims[:-1], dims[1:]):
            key, kw, kb = jax.random.split(key, 3)
            bound = 1.0 / float(d_in) ** 0.5
            self.weights.append(
                jax.random.uniform(kw, (d_in, d_out), jnp.float32, -bound, bound))
            self.biases.append(
                jax.random.uniform(kb, (1, d_out), jnp.float32, -bound, bound))

        align = _tpu_spec()["mxu_align"]
        n_layers = len(self.weights)

        if not use_conv:
            # Rows path: (d_in_pad, d_out_pad) / (1, d_out_pad).  Hidden AND
            # final widths zero-padded to lane/MXU multiples -> lane-dense
            # intermediates and stores; exact because padded weights/biases are
            # zero and ReLU(0) = 0.  __call__ slices the padded output columns.
            self._rows_w, self._rows_b = [], []
            prev = in_dim           # first-layer K stays unpadded (x isn't padded)
            for w, b in zip(self.weights, self.biases):
                d_in, d_out = int(w.shape[0]), int(w.shape[1])
                d_out_p = _pad_dim(d_out, align)
                wp = jnp.zeros((prev, d_out_p), jnp.float32).at[:d_in, :d_out].set(w)
                bp = jnp.zeros((1, d_out_p), jnp.float32).at[:, :d_out].set(b)
                if mxu_dtype is not None:
                    wp = wp.astype(mxu_dtype)
                self._rows_w.append(wp)
                self._rows_b.append(bp)
                prev = d_out_p
        else:
            # Conv path: pre-transposed (d_out_pad, d_in_pad) / (d_out_pad, 1).
            # Spatial sits on lanes, so only hidden widths need padding; the
            # final layer keeps out_dim rows (avoids padded-channel writeback).
            self._conv_w, self._conv_b = [], []
            prev = in_dim
            for i, (w, b) in enumerate(zip(self.weights, self.biases)):
                d_in, d_out = int(w.shape[0]), int(w.shape[1])
                d_out_p = d_out if i == n_layers - 1 else _pad_dim(d_out, align)
                wp = jnp.zeros((d_out_p, prev), jnp.float32).at[:d_out, :d_in].set(w.T)
                bp = jnp.zeros((d_out_p, 1), jnp.float32).at[:d_out, :].set(b.T)
                if mxu_dtype is not None:
                    wp = wp.astype(mxu_dtype)
                self._conv_w.append(wp)
                self._conv_b.append(bp)
                prev = d_out_p

    def __call__(self, x):
        # bf16 activations are supported naturally: pass a bf16 x and both the
        # kernel I/O and output dtype follow it (halves activation HBM traffic).
        if self.use_conv:
            N, C, H, W = x.shape
            # NCHW kept end-to-end; (N,C,H,W)->(N,C,H*W) is a free reshape.
            y = mlp_pallas_conv(x.reshape(N, C, H * W), self._conv_w, self._conv_b,
                                mxu_dtype=self.mxu_dtype)
            return y.reshape(N, self.out_dim, H, W)
        lead = x.shape[:-1]
        y2d = mlp_pallas_rows(x.reshape(-1, x.shape[-1]), self._rows_w, self._rows_b,
                              mxu_dtype=self.mxu_dtype)
        return y2d[:, :self.out_dim].reshape(*lead, self.out_dim)


# ----------------------------------------------------------------------------
# Pure-JAX references + test
# ----------------------------------------------------------------------------
def _reference_rows(x, weights, biases, out_dim):
    lead = x.shape[:-1]
    h = x.reshape(-1, x.shape[-1]).astype(jnp.float32)
    for li, (w, b) in enumerate(zip(weights, biases)):
        h = h @ w + b
        if li != len(weights) - 1:
            h = jnp.maximum(h, 0.0)
    return h.reshape(*lead, out_dim)


def _reference_conv(x, weights, biases, out_dim):
    N, C, H, W = x.shape
    h = jnp.transpose(x, (0, 2, 3, 1)).reshape(-1, C).astype(jnp.float32)
    for li, (w, b) in enumerate(zip(weights, biases)):
        h = h @ w + b
        if li != len(weights) - 1:
            h = jnp.maximum(h, 0.0)
    return jnp.transpose(h.reshape(N, H, W, out_dim), (0, 3, 1, 2))


if __name__ == "__main__":
    in_dim, out_dim, hidden_list = 4, 3, [32, 32]
    kx1, kx2 = jax.random.split(jax.random.PRNGKey(0))

    x = jax.random.normal(kx1, (2, 8, in_dim), dtype=jnp.float32)
    xc = jax.random.normal(kx2, (2, in_dim, 16, 16), dtype=jnp.float32)

    # --- Linear variant, exact f32 MXU operands. ---
    mlp_f32 = MLPPallas(in_dim, out_dim, hidden_list, use_conv=False,
                        key=jax.random.PRNGKey(42), mxu_dtype=None)
    y = jax.block_until_ready(mlp_f32(x))
    y_ref = _reference_rows(x, mlp_f32.weights, mlp_f32.biases, out_dim)
    assert y.shape == (2, 8, out_dim), y.shape
    assert jnp.allclose(y, y_ref, atol=1e-5, rtol=1e-5), "linear(f32) mismatch"

    # --- Linear variant, default bf16 MXU operands (f32 accumulation). ---
    mlp_bf16 = MLPPallas(in_dim, out_dim, hidden_list, use_conv=False,
                         key=jax.random.PRNGKey(42))
    yb = jax.block_until_ready(mlp_bf16(x))
    assert yb.shape == (2, 8, out_dim), yb.shape
    assert jnp.allclose(yb, y_ref, atol=5e-2, rtol=5e-2), "linear(bf16) mismatch"

    # --- 1x1-conv variant (NCHW), exact f32 MXU operands. ---
    conv_f32 = MLPPallas(in_dim, out_dim, hidden_list, use_conv=True,
                         key=jax.random.PRNGKey(7), mxu_dtype=None)
    yc = jax.block_until_ready(conv_f32(xc))
    yc_ref = _reference_conv(xc, conv_f32.weights, conv_f32.biases, out_dim)
    assert yc.shape == (2, out_dim, 16, 16), yc.shape
    assert jnp.allclose(yc, yc_ref, atol=1e-5, rtol=1e-5), "conv(f32) mismatch"

    # --- 1x1-conv variant, default bf16 MXU operands. ---
    conv_bf16 = MLPPallas(in_dim, out_dim, hidden_list, use_conv=True,
                          key=jax.random.PRNGKey(7))
    ycb = jax.block_until_ready(conv_bf16(xc))
    assert ycb.shape == (2, out_dim, 16, 16), ycb.shape
    assert jnp.allclose(ycb, yc_ref, atol=5e-2, rtol=5e-2), "conv(bf16) mismatch"

    print("KERNEL_OK")
</pallas_src>

<mosaic_0001>
module attributes {stable_mosaic.version = 11 : i64} {
  func.func @_probe_kernel(%arg0: i32, %arg1: memref<8x128xf32, #tpu.memory_space<vmem>>, %arg2: memref<8x128xf32, #tpu.memory_space<vmem>>, %arg3: memref<8x128xf32, #tpu.memory_space<vmem>>) attributes {dimension_semantics = [#tpu.dimension_semantics<arbitrary>], iteration_bounds = array<i64: 2>, scalar_prefetch = 0 : i64, scratch_operands = 0 : i64, tpu.core_type = #tpu.core_type<tc>, window_params = [{transform_indices = @transform_0, window_bounds = array<i64: 8, 128>}, {pipeline_mode = #tpu.pipeline_mode<synchronous>, transform_indices = @transform_1, window_bounds = array<i64: 8, 128>}, {transform_indices = @transform_2, window_bounds = array<i64: 8, 128>}]} {
    %c0 = arith.constant 0 : index
    %c0_0 = arith.constant 0 : index
    %0 = vector.load %arg1[%c0, %c0_0] : memref<8x128xf32, #tpu.memory_space<vmem>>, vector<8x128xf32>
    %c0_1 = arith.constant 0 : index
    %c0_2 = arith.constant 0 : index
    %1 = vector.load %arg2[%c0_1, %c0_2] : memref<8x128xf32, #tpu.memory_space<vmem>>, vector<8x128xf32>
    %2 = arith.addf %0, %1 : vector<8x128xf32>
    %c0_3 = arith.constant 0 : index
    %c0_4 = arith.constant 0 : index
    %3 = vector.load %arg3[%c0_3, %c0_4] : memref<8x128xf32, #tpu.memory_space<vmem>>, vector<8x128xf32>
    tpu.vector_store %arg3[%c0_3, %c0_4], %2 {strides = array<i32>} : memref<8x128xf32, #tpu.memory_space<vmem>>, vector<8x128xf32>,
    return
  }
  func.func @transform_0(%arg0: i32) -> (i32, i32) {
    %c0_i32 = arith.constant 0 : i32
    %c0_i32_0 = arith.constant 0 : i32
    return %arg0, %c0_i32 : i32, i32
  }
  func.func @transform_1(%arg0: i32) -> (i32, i32) {
    %c0_i32 = arith.constant 0 : i32
    %c0_i32_0 = arith.constant 0 : i32
    %c0_i32_1 = arith.constant 0 : i32
    return %c0_i32, %c0_i32_0 : i32, i32
  }
  func.func @transform_2(%arg0: i32) -> (i32, i32) {
    %c0_i32 = arith.constant 0 : i32
    %c0_i32_0 = arith.constant 0 : i32
    return %arg0, %c0_i32 : i32, i32
  }
}

module attributes {stable_mosaic.version = 11 : i64} {
  func.func @_mlp_rows_kernel(%arg0: i32, %arg1: memref<16x4xf32, #tpu.memory_space<vmem>>, %arg2: memref<4x128xf32, #tpu.memory_space<vmem>>, %arg3: memref<1x128xf32, #tpu.memory_space<vmem>>, %arg4: memref<128x128xf32, #tpu.memory_space<vmem>>, %arg5: memref<1x128xf32, #tpu.memory_space<vmem>>, %arg6: memref<128x128xf32, #tpu.memory_space<vmem>>, %arg7: memref<1x128xf32, #tpu.memory_space<vmem>>, %arg8: memref<16x128xf32, #tpu.memory_space<vmem>>) attributes {dimension_semantics = [#tpu.dimension_semantics<parallel>], iteration_bounds = array<i64: 1>, scalar_prefetch = 0 : i64, scratch_operands = 0 : i64, tpu.core_type = #tpu.core_type<tc>, window_params = [{transform_indices = @transform_0, window_bounds = array<i64: 16, 4>}, {pipeline_mode = #tpu.pipeline_mode<synchronous>, transform_indices = @transform_1, window_bounds = array<i64: 4, 128>}, {pipeline_mode = #tpu.pipeline_mode<synchronous>, transform_indices = @transform_2, window_bounds = array<i64: 1, 128>}, {pipeline_mode = #tpu.pipeline_mode<synchronous>, transform_indices = @transform_3, window_bounds = array<i64: 128, 128>}, {pipeline_mode = #tpu.pipeline_mode<synchronous>, transform_indices = @transform_4, window_bounds = array<i64: 1, 128>}, {pipeline_mode = #tpu.pipeline_mode<synchronous>, transform_indices = @transform_5, window_bounds = array<i64: 128, 128>}, {pipeline_mode = #tpu.pipeline_mode<synchronous>, transform_indices = @transform_6, window_bounds = array<i64: 1, 128>}, {transform_indices = @transform_7, window_bounds = array<i64: 16, 128>}]} {
    %c0 = arith.constant 0 : index
    %c0_0 = arith.constant 0 : index
    %0 = vector.load %arg1[%c0, %c0_0] : memref<16x4xf32, #tpu.memory_space<vmem>>, vector<16x4xf32>
    %c0_1 = arith.constant 0 : index
    %c0_2 = arith.constant 0 : index
    %1 = vector.load %arg2[%c0_1, %c0_2] : memref<4x128xf32, #tpu.memory_space<vmem>>, vector<4x128xf32>
    %c0_3 = arith.constant 0 : index
    %c0_4 = arith.constant 0 : index
    %2 = vector.load %arg3[%c0_3, %c0_4] : memref<1x128xf32, #tpu.memory_space<vmem>>, vector<1x128xf32>
    %cst = arith.constant dense<0.000000e+00> : vector<16x128xf32>
    %3 = tpu.matmul %0, %1, %cst {dimension_numbers = #tpu.dot_dimension_numbers<[1], [0], [0], [1], [0, 0, 1, 1], [], []>} : vector<16x4xf32>, vector<4x128xf32>, vector<16x128xf32> -> vector<16x128xf32>
    %4 = vector.broadcast %2 : vector<1x128xf32> to vector<16x128xf32>
    %5 = arith.addf %3, %4 : vector<16x128xf32>
    %cst_5 = arith.constant 0.000000e+00 : f32
    %6 = vector.broadcast %cst_5 : f32 to vector<16x128xf32>
    %7 = arith.maximumf %5, %6 : vector<16x128xf32>
    %c0_6 = arith.constant 0 : index
    %c0_7 = arith.constant 0 : index
    %8 = vector.load %arg4[%c0_6, %c0_7] : memref<128x128xf32, #tpu.memory_space<vmem>>, vector<128x128xf32>
    %c0_8 = arith.constant 0 : index
    %c0_9 = arith.constant 0 : index
    %9 = vector.load %arg5[%c0_8, %c0_9] : memref<1x128xf32, #tpu.memory_space<vmem>>, vector<1x128xf32>
    %cst_10 = arith.constant dense<0.000000e+00> : vector<16x128xf32>
    %10 = tpu.matmul %7, %8, %cst_10 {dimension_numbers = #tpu.dot_dimension_numbers<[1], [0], [0], [1], [0, 0, 1, 1], [], []>} : vector<16x128xf32>, vector<128x128xf32>, vector<16x128xf32> -> vector<16x128xf32>
    %11 = vector.broadcast %9 : vector<1x128xf32> to vector<16x128xf32>
    %12 = arith.addf %10, %11 : vector<16x128xf32>
    %cst_11 = arith.constant 0.000000e+00 : f32
    %13 = vector.broadcast %cst_11 : f32 to vector<16x128xf32>
    %14 = arith.maximumf %12, %13 : vector<16x128xf32>
    %c0_12 = arith.constant 0 : index
    %c0_13 = arith.constant 0 : index
    %15 = vector.load %arg6[%c0_12, %c0_13] : memref<128x128xf32, #tpu.memory_space<vmem>>, vector<128x128xf32>
    %c0_14 = arith.constant 0 : index
    %c0_15 = arith.constant 0 : index
    %16 = vector.load %arg7[%c0_14, %c0_15] : memref<1x128xf32, #tpu.memory_space<vmem>>, vector<1x128xf32>
    %cst_16 = arith.constant dense<0.000000e+00> : vector<16x128xf32>
    %17 = tpu.matmul %14, %15, %cst_16 {dimension_numbers = #tpu.dot_dimension_numbers<[1], [0], [0], [1], [0, 0, 1, 1], [], []>} : vector<16x128xf32>, vector<128x128xf32>, vector<16x128xf32> -> vector<16x128xf32>
    %18 = vector.broadcast %16 : vector<1x128xf32> to vector<16x128xf32>
    %19 = arith.addf %17, %18 : vector<16x128xf32>
    %c0_17 = arith.constant 0 : index
    %c0_18 = arith.constant 0 : index
    %20 = vector.load %arg8[%c0_17, %c0_18] : memref<16x128xf32, #tpu.memory_space<vmem>>, vector<16x128xf32>
    tpu.vector_store %arg8[%c0_17, %c0_18], %19 {strides = array<i32>} : memref<16x128xf32, #tpu.memory_space<vmem>>, vector<16x128xf32>,
    return
  }
  func.func @transform_0(%arg0: i32) -> (i32, i32) {
    %c0_i32 = arith.constant 0 : i32
    %c0_i32_0 = arith.constant 0 : i32
    return %arg0, %c0_i32 : i32, i32
  }
  func.func @transform_1(%arg0: i32) -> (i32, i32) {
    %c0_i32 = arith.constant 0 : i32
    %c0_i32_0 = arith.constant 0 : i32
    %c0_i32_1 = arith.constant 0 : i32
    return %c0_i32, %c0_i32_0 : i32, i32
  }
  func.func @transform_2(%arg0: i32) -> (i32, i32) {
    %c0_i32 = arith.constant 0 : i32
    %c0_i32_0 = arith.constant 0 : i32
    %c0_i32_1 = arith.constant 0 : i32
    return %c0_i32, %c0_i32_0 : i32, i32
  }
  func.func @transform_3(%arg0: i32) -> (i32, i32) {
    %c0_i32 = arith.constant 0 : i32
    %c0_i32_0 = arith.constant 0 : i32
    %c0_i32_1 = arith.constant 0 : i32
    return %c0_i32, %c0_i32_0 : i32, i32
  }
  func.func @transform_4(%arg0: i32) -> (i32, i32) {
    %c0_i32 = arith.constant 0 : i32
    %c0_i32_0 = arith.constant 0 : i32
    %c0_i32_1 = arith.constant 0 : i32
    return %c0_i32, %c0_i32_0 : i32, i32
  }
  func.func @transform_5(%arg0: i32) -> (i32, i32) {
    %c0_i32 = arith.constant 0 : i32
    %c0_i32_0 = arith.constant 0 : i32
    %c0_i32_1 = arith.constant 0 : i32
    return %c0_i32, %c0_i32_0 : i32, i32
  }
  func.func @transform_6(%arg0: i32) -> (i32, i32) {
    %c0_i32 = arith.constant 0 : i32
    %c0_i32_0 = arith.constant 0 : i32
    %c0_i32_1 = arith.constant 0 : i32
    return %c0_i32, %c0_i32_0 : i32, i32
  }
  func.func @transform_7(%arg0: i32) -> (i32, i32) {
    %c0_i32 = arith.constant 0 : i32
    %c0_i32_0 = arith.constant 0 : i32
    return %arg0, %c0_i32 : i32, i32
  }
}

</mosaic_0001>

<llo_original>
// kernel: tpu_custom_call.1
$region0: #{tpu_custom_call.1}
  #allocation0 [shape = 'u32[]', space=smem, size = 0x4, offset = 0x4, fixed_abs, tag = 'smem constant byte address 0x4 - core index']
  #allocation1 [shape = 'u32[72,128]{1,0:T(1,128)}', space=vmem, size = 0x9000, scoped, tag = 'internal scratch']
  %s0 = inlined_call_operand.hbm [shape: f32[16,128], index: 0, kind: input, shape index: {}]
  %s1 = inlined_call_operand.hbm [shape: f32[8,128], index: 1, kind: input, shape index: {}]
  %s2 = inlined_call_operand.hbm [shape: f32[16,128], index: 2, kind: output, shape index: {}]
  %s3 = sld [smem:[#allocation0]]
  $region49: #{tpu_custom_call.1} parent=0
    _
  %s5 = ssub.s32 1, %s3
  %s6 = scalar_select 0, %s5, %s3
  $region1: #{tpu_custom_call.1} parent=0
    #allocation2 [shape = 'u8[8192]{0}', space=vmem, size = 0x2000, scoped, tag = 'input window, operand 0']
    #allocation3 [shape = 's32[2]{0}', space=sflag, size = 0x8, scoped, tag = 'scoped memory for tpu_custom_call.1']
    #allocation4 [shape = 's32[2]{0}', space=sflag, size = 0x8, scoped, tag = 'scoped memory for tpu_custom_call.1']
    #allocation5 [shape = 'u8[4096]{0}', space=vmem, size = 0x1000, scoped, tag = 'input window, operand 1, single buffered']
    #allocation6 [shape = 's32[1]{0}', space=sflag, size = 0x4, scoped, tag = 'scoped memory for tpu_custom_call.1']
    #allocation7 [shape = 'u8[8192]{0}', space=vmem, size = 0x2000, scoped, tag = 'output window, operand 0']
    %7 = vsyncpa [#allocation3], 0
    %s8 = scalar_lea.sflag [#allocation3], 1
    %9 = vsyncpa %s8, 0
    %10 = vsyncpa [#allocation6], 0
    %11 = vsyncpa [#allocation4], 0
    %s12 = scalar_lea.sflag [#allocation4], 1
    %13 = vsyncpa %s12, 0
    loop: start=0, step=1, limit=4
    $region2: #{tpu_custom_call.1} parent=1 // loop_pre_header
      _
    $region3: #{tpu_custom_call.1} parent=1 // loop_header
      %s15 = sphi 0, %s19
      %p16 = scmp.ge.s32.totalorder %s15, 4
      %s25 = sphi 0, %s27
      %s28 = sphi 0, %s25
      %s29 = sphi 0, %s28
      %s45 = sphi 0, %s29
      %s49 = sphi 0, %s49
      %s51 = sphi 0, %s49
      %s52 = sphi 0, %s51
      %s66 = sphi 0, %s52
      %s72 = sphi 0, %s74
      %s75 = sphi 0, %s72
      %s76 = sphi 0, %s75
      %s92 = sphi 0, %s76
    $region4: #{tpu_custom_call.1} parent=1 // loop_header_branch
      %18 = sbr.rel (%p16) target = $region8
    $region5: #{tpu_custom_call.1} parent=1 // loop_body
      %s20 = ssub.s32 %s15, 1
      %s21 = ssub.s32 %s15, 2
      %s22 = sadd.s32 %s15, 1
      %s23 = ssub.s32 %s15, %s22
      %p24 = scmp.eq.s32.totalorder %s23, 0
      %s26 = sadd.s32 %s25, 1
      %s27 = scalar_select %p24, %s25, %s26
      %p30 = pneg %p24
      %p31 = scmp.eq.s32.totalorder %s15, 1
      %p32 = por %p30, %p31
      %p33 = scmp.ne.s32.totalorder %s25, %s28
      %p34 = scmp.eq.s32.totalorder %s15, 0
      %p35 = por %p33, %p34
      %p36 = scmp.ne.s32.totalorder %s25, %s28
      %p37 = scmp.eq.s32.totalorder %s20, 1
      %p38 = por %p36, %p37
      %p39 = scmp.ne.s32.totalorder %s28, %s29
      %p40 = scmp.eq.s32.totalorder %s20, 0
      %p41 = por %p39, %p40
      %p42 = scmp.ne.s32.totalorder %s28, %s29
      %p43 = scmp.eq.s32.totalorder %s21, 1
      %p44 = por %p42, %p43
      %p46 = scmp.ne.s32.totalorder %s29, %s45
      %p47 = scmp.eq.s32.totalorder %s21, 0
      %p48 = por %p46, %p47
      %s50 = sadd.s32 %s49, 1
      %p53 = scmp.eq.s32.totalorder %s15, 1
      %p54 = scmp.ne.s32.totalorder %s49, %s51
      %p55 = scmp.eq.s32.totalorder %s15, 0
      %p56 = por %p54, %p55
      %p57 = scmp.ne.s32.totalorder %s49, %s51
      %p58 = scmp.eq.s32.totalorder %s20, 1
      %p59 = por %p57, %p58
      %p60 = scmp.ne.s32.totalorder %s51, %s52
      %p61 = scmp.eq.s32.totalorder %s20, 0
      %p62 = por %p60, %p61
      %p63 = scmp.ne.s32.totalorder %s51, %s52
      %p64 = scmp.eq.s32.totalorder %s21, 1
      %p65 = por %p63, %p64
      %p67 = scmp.ne.s32.totalorder %s52, %s66
      %p68 = scmp.eq.s32.totalorder %s21, 0
      %p69 = por %p67, %p68
      %s70 = ssub.s32 %s15, %s22
      %p71 = scmp.eq.s32.totalorder %s70, 0
      %s73 = sadd.s32 %s72, 1
      %s74 = scalar_select %p71, %s72, %s73
      %p77 = pneg %p71
      %p78 = scmp.eq.s32.totalorder %s15, 1
      %p79 = por %p77, %p78
      %p80 = scmp.ne.s32.totalorder %s72, %s75
      %p81 = scmp.eq.s32.totalorder %s15, 0
      %p82 = por %p80, %p81
      %p83 = scmp.ne.s32.totalorder %s72, %s75
      %p84 = scmp.eq.s32.totalorder %s20, 1
      %p85 = por %p83, %p84
      %p86 = scmp.ne.s32.totalorder %s75, %s76
      %p87 = scmp.eq.s32.totalorder %s20, 0
      %p88 = por %p86, %p87
      %p89 = scmp.ne.s32.totalorder %s75, %s76
      %p90 = scmp.eq.s32.totalorder %s21, 1
      %p91 = por %p89, %p90
      %p93 = scmp.ne.s32.totalorder %s76, %s92
      %p94 = scmp.eq.s32.totalorder %s21, 0
      %p95 = por %p93, %p94
      %p96 = scmp.le.s32.totalorder 1, %s15
      %p97 = scmp.lt.s32.totalorder %s15, 3
      %p98 = pnand %p96, %p97
      %p99 = pneg %p98
      // Predicated region
      $region9: #{tpu_custom_call.1} parent=5 // pred_check
        _
      $region10: #{tpu_custom_call.1} parent=5 // pred_check_branch
        %101 = sbr.rel (%p98) target = $region12
      $region11: #{tpu_custom_call.1} parent=5 // pred_region
        %s102 = ssub.s32 %s15, 1
        // Predicated region
        $region13: #{tpu_custom_call.1} parent=11 // pred_check
          %p103 = pneg %p62
        $region14: #{tpu_custom_call.1} parent=11 // pred_check_branch
          %105 = sbr.rel (%p103) target = $region16
        $region15: #{tpu_custom_call.1} parent=11 // pred_region
          %107 = vsyncadd [#allocation6], 0
          %s109 = sshll.u32 %s1, 4
          %s110 = int_to_ptr.hbm [resolvable:$true] %s109
          %s111 = sshll.u32 [#allocation5], 4
          %s112 = int_to_ptr.vmem [resolvable:$true] %s111
          %114 = dma.hbm_to_vmem [thread:$0]  %s110, 128, %s112, [#allocation6]
        $region16: #{tpu_custom_call.1} parent=11 // pred_fallthru
          _
      $region12: #{tpu_custom_call.1} parent=5 // pred_fallthru
        _
      %p115 = scmp.lt.s32.totalorder %s15, 2
      // Predicated region
      $region17: #{tpu_custom_call.1} parent=5 // pred_check
        %p116 = pneg %p115
      $region18: #{tpu_custom_call.1} parent=5 // pred_check_branch
        %118 = sbr.rel (%p116) target = $region20
      $region19: #{tpu_custom_call.1} parent=5 // pred_region
        // Predicated region
        $region21: #{tpu_custom_call.1} parent=19 // pred_check
          %p119 = pneg %p35
        $region22: #{tpu_custom_call.1} parent=19 // pred_check_branch
          %121 = sbr.rel (%p119) target = $region24
        $region23: #{tpu_custom_call.1} parent=19 // pred_region
          %s122 = sand.u32 %s25, 1
          %s123 = scalar_lea.sflag [#allocation3], %s122
          %s124 = sand.u32 %s25, 1
          %s125 = smul.addr %s124, 8
          %s126 = scalar_lea.vmem [#allocation2], %s125
          %128 = vsyncadd %s123, 0
          %s129 = smul.addr %s15, 8
          %s130 = scalar_lea.hbm %s0, %s129
          %s132 = sshll.u32 %s130, 4
          %s133 = int_to_ptr.hbm [resolvable:$true] %s132
          %s134 = sshll.u32 %s126, 4
          %s135 = int_to_ptr.vmem [resolvable:$true] %s134
          %137 = dma.hbm_to_vmem [thread:$0]  %s133, 128, %s135, %s123
        $region24: #{tpu_custom_call.1} parent=19 // pred_fallthru
          _
      $region20: #{tpu_custom_call.1} parent=5 // pred_fallthru
        _
      %p138 = scmp.le.s32.totalorder 1, %s15
      %p139 = scmp.lt.s32.totalorder %s15, 3
      %p140 = pnand %p138, %p139
      %p141 = pneg %p140
      // Predicated region
      $region25: #{tpu_custom_call.1} parent=5 // pred_check
        _
      $region26: #{tpu_custom_call.1} parent=5 // pred_check_branch
        %143 = sbr.rel (%p140) target = $region28
      $region27: #{tpu_custom_call.1} parent=5 // pred_region
        %s144 = ssub.s32 %s15, 1
        %s145 = sand.u32 %s28, 1
        %s146 = scalar_lea.sflag [#allocation3], %s145
        %s147 = sand.u32 %s28, 1
        %s148 = smul.addr %s147, 8
        %s149 = scalar_lea.vmem [#allocation2], %s148
        // Predicated region
        $region29: #{tpu_custom_call.1} parent=27 // pred_check
          %p150 = pneg %p41
        $region30: #{tpu_custom_call.1} parent=27 // pred_check_branch
          %152 = sbr.rel (%p150) target = $region32
        $region31: #{tpu_custom_call.1} parent=27 // pred_region
          %154 = dma.done %s146, 128
        $region32: #{tpu_custom_call.1} parent=27 // pred_fallthru
          _
        // Predicated region
        $region33: #{tpu_custom_call.1} parent=27 // pred_check
          %p155 = pneg %p62
        $region34: #{tpu_custom_call.1} parent=27 // pred_check_branch
          %157 = sbr.rel (%p155) target = $region36
        $region35: #{tpu_custom_call.1} parent=27 // pred_region
          %159 = dma.done [#allocation6], 128
        $region36: #{tpu_custom_call.1} parent=27 // pred_fallthru
          _
        %s160 = sand.u32 %s28, 1
        %s161 = scalar_lea.sflag [#allocation3], %s160
        %s162 = sand.u32 %s28, 1
        %s163 = smul.addr %s162, 8
        %s164 = scalar_lea.vmem [#allocation2], %s163
        %p165 = pneg %p41
        %p166 = pneg %p38
        %p167 = pneg %p62
        %p168 = pneg %p59
        %p169 = pneg %p88
        %p170 = pneg %p85
        %s171 = sand.u32 %s75, 1
        %s172 = scalar_lea.sflag [#allocation4], %s171
        %s173 = sand.u32 %s75, 1
        %s174 = smul.addr %s173, 8
        %s175 = scalar_lea.vmem [#allocation7], %s174
        %v176 = vld [vmem:[%s149] sm:$0xff]
        %v177 = vld [vmem:[#allocation5] sm:$0xff]
        %v178 = vadd.f32 %v176, %v177
        %179 = vst [vmem:[%s175] sm:$0xff] %v178
        %s180 = sand.u32 %s75, 1
        %s181 = scalar_lea.sflag [#allocation4], %s180
        %s182 = sand.u32 %s75, 1
        %s183 = smul.addr %s182, 8
        %s184 = scalar_lea.vmem [#allocation7], %s183
        // Predicated region
        $region37: #{tpu_custom_call.1} parent=27 // pred_check
          %p185 = pneg %p85
        $region38: #{tpu_custom_call.1} parent=27 // pred_check_branch
          %187 = sbr.rel (%p185) target = $region40
        $region39: #{tpu_custom_call.1} parent=27 // pred_region
          %189 = vsyncadd %s181, 0
          %s190 = smul.addr %s20, 8
          %s191 = scalar_lea.hbm %s2, %s190
          %s193 = sshll.u32 %s184, 4
          %s194 = int_to_ptr.vmem [resolvable:$true] %s193
          %s195 = sshll.u32 %s191, 4
          %s196 = int_to_ptr.hbm [resolvable:$true] %s195
          %198 = dma.vmem_to_hbm [thread:$0]  %s194, 128, %s196, %s181
        $region40: #{tpu_custom_call.1} parent=27 // pred_fallthru
          _
      $region28: #{tpu_custom_call.1} parent=5 // pred_fallthru
        _
      %p199 = scmp.le.s32.totalorder 2, %s15
      // Predicated region
      $region41: #{tpu_custom_call.1} parent=5 // pred_check
        %p200 = pneg %p199
      $region42: #{tpu_custom_call.1} parent=5 // pred_check_branch
        %202 = sbr.rel (%p200) target = $region44
      $region43: #{tpu_custom_call.1} parent=5 // pred_region
        %s203 = ssub.s32 %s15, 2
        // Predicated region
        $region45: #{tpu_custom_call.1} parent=43 // pred_check
          %p204 = pneg %p91
        $region46: #{tpu_custom_call.1} parent=43 // pred_check_branch
          %206 = sbr.rel (%p204) target = $region48
        $region47: #{tpu_custom_call.1} parent=43 // pred_region
          %s207 = sand.u32 %s76, 1
          %s208 = scalar_lea.sflag [#allocation4], %s207
          %s209 = sand.u32 %s76, 1
          %s210 = smul.addr %s209, 8
          %s211 = scalar_lea.vmem [#allocation7], %s210
          %213 = dma.done %s208, 128
        $region48: #{tpu_custom_call.1} parent=43 // pred_fallthru
          _
      $region44: #{tpu_custom_call.1} parent=5 // pred_fallthru
        _
    $region6: #{tpu_custom_call.1} parent=1 // loop_footer
      %s19 = sadd.s32 1, %s15
    $region7: #{tpu_custom_call.1} parent=1 // loop_footer_branch
      %14 = sbr.rel target = $region3
    $region8: #{tpu_custom_call.1} parent=1 // loop_exit
      _
    %214 = vsyncpa [#allocation3], 1
    %s215 = scalar_lea.sflag [#allocation3], 1
    %216 = vsyncpa %s215, 1
    %217 = vsyncpa [#allocation6], 1
    %218 = vsyncpa [#allocation4], 1
    %s219 = scalar_lea.sflag [#allocation4], 1
    %220 = vsyncpa %s219, 1

// kernel: tpu_custom_call.1
$region0: #{tpu_custom_call.1}
  #allocation0 [shape = 'u32[]', space=smem, size = 0x4, offset = 0x4, fixed_abs, tag = 'smem constant byte address 0x4 - core index']
  #allocation1 [shape = 'u32[72,128]{1,0:T(1,128)}', space=vmem, size = 0x9000, scoped, tag = 'internal scratch']
  %s0 = inlined_call_operand.vmem [shape: f32[16,4], index: 0, kind: input, shape index: {}]
  %s1 = inlined_call_operand.vmem [shape: f32[4,128], index: 1, kind: input, shape index: {}]
  %s2 = inlined_call_operand.vmem [shape: f32[1,128], index: 2, kind: input, shape index: {}]
  %s3 = inlined_call_operand.hbm [shape: f32[128,128], index: 3, kind: input, shape index: {}]
  %s4 = inlined_call_operand.vmem [shape: f32[1,128], index: 4, kind: input, shape index: {}]
  %s5 = inlined_call_operand.hbm [shape: f32[128,128], index: 5, kind: input, shape index: {}]
  %s6 = inlined_call_operand.vmem [shape: f32[1,128], index: 6, kind: input, shape index: {}]
  %s7 = inlined_call_operand.hbm [shape: f32[16,128], index: 7, kind: output, shape index: {}]
  %s8 = sld [smem:[#allocation0]]
  $region46: #{tpu_custom_call.1} parent=0
    _
  %s10 = ssub.s32 1, %s8
  %s11 = scalar_select 0, %s10, %s8
  $region1: #{tpu_custom_call.1} parent=0
    #allocation2 [shape = 'u8[65536]{0}', space=vmem, size = 0x10000, scoped, tag = 'input window, operand 3, single buffered']
    #allocation3 [shape = 's32[1]{0}', space=sflag, size = 0x4, scoped, tag = 'scoped memory for tpu_custom_call.1']
    #allocation4 [shape = 's32[1]{0}', space=sflag, size = 0x4, scoped, tag = 'scoped memory for tpu_custom_call.1']
    #allocation5 [shape = 'u8[65536]{0}', space=vmem, size = 0x10000, scoped, tag = 'input window, operand 5, single buffered']
    #allocation6 [shape = 's32[1]{0}', space=sflag, size = 0x4, scoped, tag = 'scoped memory for tpu_custom_call.1']
    #allocation7 [shape = 'u8[8192]{0}', space=vmem, size = 0x2000, scoped, tag = 'output window, operand 0, single buffered']
    %12 = vsyncpa [#allocation3], 0
    %13 = vsyncpa [#allocation6], 0
    %14 = vsyncpa [#allocation4], 0
    // Predicated region
    $region2: #{tpu_custom_call.1} parent=1 // pred_check
      _
    $region3: #{tpu_custom_call.1} parent=1 // pred_check_branch
      %16 = sbr.rel (0) target = $region5
    $region4: #{tpu_custom_call.1} parent=1 // pred_region
      _
    $region5: #{tpu_custom_call.1} parent=1 // pred_fallthru
      _
    // Predicated region
    $region6: #{tpu_custom_call.1} parent=1 // pred_check
      _
    $region7: #{tpu_custom_call.1} parent=1 // pred_check_branch
      %18 = sbr.rel (0) target = $region9
    $region8: #{tpu_custom_call.1} parent=1 // pred_region
      _
    $region9: #{tpu_custom_call.1} parent=1 // pred_fallthru
      _
    // Predicated region
    $region10: #{tpu_custom_call.1} parent=1 // pred_check
      _
    $region11: #{tpu_custom_call.1} parent=1 // pred_check_branch
      %20 = sbr.rel (0) target = $region13
    $region12: #{tpu_custom_call.1} parent=1 // pred_region
      _
    $region13: #{tpu_custom_call.1} parent=1 // pred_fallthru
      _
    // Predicated region
    $region14: #{tpu_custom_call.1} parent=1 // pred_check
      _
    $region15: #{tpu_custom_call.1} parent=1 // pred_check_branch
      %22 = sbr.rel (0) target = $region17
    $region16: #{tpu_custom_call.1} parent=1 // pred_region
      %24 = vsyncadd [#allocation3], 0
      %s25 = sshll.u32 %s3, 4
      %s26 = int_to_ptr.hbm [resolvable:$true] %s25
      %s27 = sshll.u32 [#allocation2], 4
      %s28 = int_to_ptr.vmem [resolvable:$true] %s27
      %33 = dma.hbm_to_vmem [thread:$0]  %s26, 2048, %s28, [#allocation3], 128, 128, 8
    $region17: #{tpu_custom_call.1} parent=1 // pred_fallthru
      _
    // Predicated region
    $region18: #{tpu_custom_call.1} parent=1 // pred_check
      _
    $region19: #{tpu_custom_call.1} parent=1 // pred_check_branch
      %35 = sbr.rel (0) target = $region21
    $region20: #{tpu_custom_call.1} parent=1 // pred_region
      _
    $region21: #{tpu_custom_call.1} parent=1 // pred_fallthru
      _
    // Predicated region
    $region22: #{tpu_custom_call.1} parent=1 // pred_check
      _
    $region23: #{tpu_custom_call.1} parent=1 // pred_check_branch
      %37 = sbr.rel (0) target = $region25
    $region24: #{tpu_custom_call.1} parent=1 // pred_region
      %39 = vsyncadd [#allocation6], 0
      %s40 = sshll.u32 %s5, 4
      %s41 = int_to_ptr.hbm [resolvable:$true] %s40
      %s42 = sshll.u32 [#allocation5], 4
      %s43 = int_to_ptr.vmem [resolvable:$true] %s42
      %48 = dma.hbm_to_vmem [thread:$0]  %s41, 2048, %s43, [#allocation6], 128, 128, 8
    $region25: #{tpu_custom_call.1} parent=1 // pred_fallthru
      _
    // Predicated region
    $region26: #{tpu_custom_call.1} parent=1 // pred_check
      _
    $region27: #{tpu_custom_call.1} parent=1 // pred_check_branch
      %50 = sbr.rel (0) target = $region29
    $region28: #{tpu_custom_call.1} parent=1 // pred_region
      _
    $region29: #{tpu_custom_call.1} parent=1 // pred_fallthru
      _
    // Predicated region
    $region30: #{tpu_custom_call.1} parent=1 // pred_check
      _
    $region31: #{tpu_custom_call.1} parent=1 // pred_check_branch
      %52 = sbr.rel (0) target = $region33
    $region32: #{tpu_custom_call.1} parent=1 // pred_region
      %54 = dma.done [#allocation3], 2048
    $region33: #{tpu_custom_call.1} parent=1 // pred_fallthru
      _
    // Predicated region
    $region34: #{tpu_custom_call.1} parent=1 // pred_check
      _
    $region35: #{tpu_custom_call.1} parent=1 // pred_check_branch
      %56 = sbr.rel (0) target = $region37
    $region36: #{tpu_custom_call.1} parent=1 // pred_region
      %58 = dma.done [#allocation6], 2048
    $region37: #{tpu_custom_call.1} parent=1 // pred_fallthru
      _
    %v59 = vld [vmem:[%s0] sm:$0xff]
    %v60 = vld [vmem:[%s0 + $0x8] sm:$0xff]
    %v61 = vld [vmem:[%s1] sm:$0xf]
    %v62 = vld [vmem:[%s2] sm:$0x1]
    %v64 = vperm.slane %v62, 0
    %vm66 = vcmask 31744
    %v68 = vsel %vm66, %v59, 0
    %v71 = vsel %vm66, %v60, 0
    %vm73 = vcmask 1043456
    %v75 = vsel %vm73, %v61, 0
    %77 = vmatpush.msra.mxu0 0.0
    %78 = vmatpush.msra.mxu0 0.0
    %79 = vmatpush.msra.mxu0 0.0
    %80 = vmatpush.msra.mxu0 0.0
    %81 = vmatpush.msra.mxu0 0.0
    %82 = vmatpush.msra.mxu0 0.0
    %83 = vmatpush.msra.mxu0 0.0
    %84 = vmatpush.msra.mxu0 0.0
    %85 = vmatpush.msra.mxu0 0.0
    %86 = vmatpush.msra.mxu0 0.0
    %87 = vmatpush.msra.mxu0 0.0
    %88 = vmatpush.msra.mxu0 0.0
    %89 = vmatpush.msra.mxu0 0.0
    %90 = vmatpush.msra.mxu0 0.0
    %91 = vmatpush.msra.mxu0 0.0
    %92 = vmatpush.msra.mxu0 %v75
    %93 = vmatmul.f32.gmra.mxu0 %v68
    %v94 = vpop.f32.mrf.mxu0
    %v95 = vadd.f32 %v64, %v94
    %96 = vmatmul.f32.gmra.mxu0 %v71
    %v97 = vpop.f32.mrf.mxu0
    %v98 = vadd.f32 %v64, %v97
    %99 = vdwg.mxu0
    %v100 = vmax.f32 %v95, 0.0
    %v101 = vmax.f32 %v98, 0.0
    %v102 = vld [vmem:[#allocation2] sm:$0xff]
    %v103 = vld [vmem:[#allocation2 + $0x8] sm:$0xff]
    %v104 = vld [vmem:[#allocation2 + $0x10] sm:$0xff]
    %v105 = vld [vmem:[#allocation2 + $0x18] sm:$0xff]
    %v106 = vld [vmem:[#allocation2 + $0x20] sm:$0xff]
    %v107 = vld [vmem:[#allocation2 + $0x28] sm:$0xff]
    %v108 = vld [vmem:[#allocation2 + $0x30] sm:$0xff]
    %v109 = vld [vmem:[#allocation2 + $0x38] sm:$0xff]
    %v110 = vld [vmem:[#allocation2 + $0x40] sm:$0xff]
    %v111 = vld [vmem:[#allocation2 + $0x48] sm:$0xff]
    %v112 = vld [vmem:[#allocation2 + $0x50] sm:$0xff]
    %v113 = vld [vmem:[#allocation2 + $0x58] sm:$0xff]
    %v114 = vld [vmem:[#allocation2 + $0x60] sm:$0xff]
    %v115 = vld [vmem:[#allocation2 + $0x68] sm:$0xff]
    %v116 = vld [vmem:[#allocation2 + $0x70] sm:$0xff]
    %v117 = vld [vmem:[#allocation2 + $0x78] sm:$0xff]
    %v118 = vld [vmem:[%s4] sm:$0x1]
    %v120 = vperm.slane %v118, 0
    %122 = vmatpush.msra.mxu0 %v117
    %123 = vmatpush.msra.mxu0 %v116
    %124 = vmatpush.msra.mxu0 %v115
    %125 = vmatpush.msra.mxu0 %v114
    %126 = vmatpush.msra.mxu0 %v113
    %127 = vmatpush.msra.mxu0 %v112
    %128 = vmatpush.msra.mxu0 %v111
    %129 = vmatpush.msra.mxu0 %v110
    %130 = vmatpush.msra.mxu0 %v109
    %131 = vmatpush.msra.mxu0 %v108
    %132 = vmatpush.msra.mxu0 %v107
    %133 = vmatpush.msra.mxu0 %v106
    %134 = vmatpush.msra.mxu0 %v105
    %135 = vmatpush.msra.mxu0 %v104
    %136 = vmatpush.msra.mxu0 %v103
    %137 = vmatpush.msra.mxu0 %v102
    %138 = vmatmul.f32.gmra.mxu0 %v100
    %v139 = vpop.f32.mrf.mxu0
    %v140 = vadd.f32 %v120, %v139
    %141 = vmatmul.f32.gmra.mxu0 %v101
    %v142 = vpop.f32.mrf.mxu0
    %v143 = vadd.f32 %v120, %v142
    %144 = vdwg.mxu0
    %v145 = vmax.f32 %v140, 0.0
    %v146 = vmax.f32 %v143, 0.0
    %v147 = vld [vmem:[#allocation5] sm:$0xff]
    %v148 = vld [vmem:[#allocation5 + $0x8] sm:$0xff]
    %v149 = vld [vmem:[#allocation5 + $0x10] sm:$0xff]
    %v150 = vld [vmem:[#allocation5 + $0x18] sm:$0xff]
    %v151 = vld [vmem:[#allocation5 + $0x20] sm:$0xff]
    %v152 = vld [vmem:[#allocation5 + $0x28] sm:$0xff]
    %v153 = vld [vmem:[#allocation5 + $0x30] sm:$0xff]
    %v154 = vld [vmem:[#allocation5 + $0x38] sm:$0xff]
    %v155 = vld [vmem:[#allocation5 + $0x40] sm:$0xff]
    %v156 = vld [vmem:[#allocation5 + $0x48] sm:$0xff]
    %v157 = vld [vmem:[#allocation5 + $0x50] sm:$0xff]
    %v158 = vld [vmem:[#allocation5 + $0x58] sm:$0xff]
    %v159 = vld [vmem:[#allocation5 + $0x60] sm:$0xff]
    %v160 = vld [vmem:[#allocation5 + $0x68] sm:$0xff]
    %v161 = vld [vmem:[#allocation5 + $0x70] sm:$0xff]
    %v162 = vld [vmem:[#allocation5 + $0x78] sm:$0xff]
    %v163 = vld [vmem:[%s6] sm:$0x1]
    %v165 = vperm.slane %v163, 0
    %167 = vmatpush.msra.mxu0 %v162
    %168 = vmatpush.msra.mxu0 %v161
    %169 = vmatpush.msra.mxu0 %v160
    %170 = vmatpush.msra.mxu0 %v159
    %171 = vmatpush.msra.mxu0 %v158
    %172 = vmatpush.msra.mxu0 %v157
    %173 = vmatpush.msra.mxu0 %v156
    %174 = vmatpush.msra.mxu0 %v155
    %175 = vmatpush.msra.mxu0 %v154
    %176 = vmatpush.msra.mxu0 %v153
    %177 = vmatpush.msra.mxu0 %v152
    %178 = vmatpush.msra.mxu0 %v151
    %179 = vmatpush.msra.mxu0 %v150
    %180 = vmatpush.msra.mxu0 %v149
    %181 = vmatpush.msra.mxu0 %v148
    %182 = vmatpush.msra.mxu0 %v147
    %183 = vmatmul.f32.gmra.mxu0 %v145
    %v184 = vpop.f32.mrf.mxu0
    %v185 = vadd.f32 %v165, %v184
    %186 = vmatmul.f32.gmra.mxu0 %v146
    %v187 = vpop.f32.mrf.mxu0
    %v188 = vadd.f32 %v165, %v187
    %189 = vdwg.mxu0
    %190 = vst [vmem:[#allocation7] sm:$0xff] %v185
    %191 = vst [vmem:[#allocation7 + $0x8] sm:$0xff] %v188
    // Predicated region
    $region38: #{tpu_custom_call.1} parent=1 // pred_check
      _
    $region39: #{tpu_custom_call.1} parent=1 // pred_check_branch
      %193 = sbr.rel (0) target = $region41
    $region40: #{tpu_custom_call.1} parent=1 // pred_region
      %195 = vsyncadd [#allocation4], 0
      %s196 = sshll.u32 [#allocation7], 4
      %s197 = int_to_ptr.vmem [resolvable:$true] %s196
      %s198 = sshll.u32 %s7, 4
      %s199 = int_to_ptr.hbm [resolvable:$true] %s198
      %204 = dma.vmem_to_hbm [thread:$0]  %s197, 256, %s199, [#allocation4], 128, 128, 8
    $region41: #{tpu_custom_call.1} parent=1 // pred_fallthru
      _
    // Predicated region
    $region42: #{tpu_custom_call.1} parent=1 // pred_check
      _
    $region43: #{tpu_custom_call.1} parent=1 // pred_check_branch
      %206 = sbr.rel (0) target = $region45
    $region44: #{tpu_custom_call.1} parent=1 // pred_region
      %208 = dma.done [#allocation4], 256
    $region45: #{tpu_custom_call.1} parent=1 // pred_fallthru
      _
    %209 = vsyncpa [#allocation3], 1
    %210 = vsyncpa [#allocation6], 1
    %211 = vsyncpa [#allocation4], 1

</llo_original>
